<compile_context>
chip_gen: v6e
topology: v6e:2x2x1
jax: 0.10.0
libtpu: 0.0.40
codegen_flags: <defaults>
</compile_context>

<pallas_src>
import functools

import numpy as np

import jax
import jax.numpy as jnp
from jax import lax
from jax.experimental import pallas as pl
from jax.experimental.pallas import tpu as pltpu


def _round_up(x, m):
    return (x + m - 1) // m * m


# ----------------------------------------------------------------------------
# Kernel: one (batch, channel-tile) step of the 1-D pixel shuffle
# ----------------------------------------------------------------------------
def _ps1d_kernel(x_ref, s_ref, o_ref, *, factor, w_chunk, dot_precision):
    # x_ref: (1, F, TC, H, W)   s_ref: (F, Wc, Wc*F)   o_ref: (1, TC, H, W*F)
    _, _f_dim, tc, h, w = x_ref.shape
    wc = w_chunk
    wcf = wc * factor
    n_chunks = w // wc

    # Static unroll: factor and n_chunks are small compile-time ints.
    for k in range(n_chunks):
        c0 = k * wc          # input lane offset of this W chunk
        j0 = k * wcf         # output lane offset of this W chunk
        for f in range(factor):
            # (TC, H, Wc) -> (TC*H, Wc).  Sublane merge is free when H % 8 == 0.
            xf = x_ref[0, f, :, :, c0:c0 + wc].reshape(tc * h, wc)
            part = jnp.dot(xf, s_ref[f],
                           preferred_element_type=jnp.float32,
                           precision=dot_precision)
            part = part.astype(o_ref.dtype).reshape(tc, h, wcf)
            if f == 0:
                o_ref[0, :, :, j0:j0 + wcf] = part       # first write, no zero-init needed
            else:
                o_ref[0, :, :, j0:j0 + wcf] += part      # disjoint nonzero lanes -> exact


# ----------------------------------------------------------------------------
# Generation-aware VMEM budgets
# ----------------------------------------------------------------------------
def _vmem_budgets():
    """(data-tile budget, scoped-vmem limit) per TPU generation."""
    kind = ""
    try:
        kind = jax.devices()[0].device_kind.lower()
    except Exception:
        pass
    if "v7" in kind or "7x" in kind:            # 64 MiB physical VMEM: stay well clear
        return 20 << 20, 48 << 20
    if "v6" in kind:                            # 128 MiB physical
        return 24 << 20, 64 << 20
    if "v5p" in kind:                           # 128 MiB physical
        return 24 << 20, 64 << 20
    if "v5e" in kind or "v5 lite" in kind or "v5lite" in kind:
        return 12 << 20, 64 << 20
    return 12 << 20, 32 << 20                   # unknown / older: stay near defaults


def _pick_w_chunk(w):
    """Lane chunk for the contraction: keeps the scatter matrix O(128^2)."""
    if w <= 128:
        return w
    if w % 128 == 0:
        return 128
    # TODO(synk): awkward W (>128, not a multiple of 128) falls back to a single
    # full-width scatter matrix (sel grows O(W^2)); fine for modest W.
    return w


def _pick_channel_tile(b, c, factor, h, w, wc, itemsize, data_budget, min_steps=4):
    """Largest divisor of C whose padded, double-buffered footprint fits the
    budget, then shrunk until the grid has >= min_steps steps (megacore /
    pipelining)."""
    hp = _round_up(h, 8)                                              # sublane padding
    in_per_ch = factor * hp * _round_up(w, 128) * itemsize            # lane padding (W<128!)
    out_per_ch = hp * _round_up(w * factor, 128) * itemsize
    acc_per_ch = hp * _round_up(wc * factor, 128) * 4                 # streamed f32 partial
    sel_bytes = 2 * factor * _round_up(wc, 8) * _round_up(wc * factor, 128) * itemsize

    divisors = [d for d in range(1, c + 1) if c % d == 0]

    def footprint(tc):
        # 2x for double-buffered in/out blocks + resident scatter matrices + partial.
        return sel_bytes + tc * (2 * (in_per_ch + out_per_ch) + acc_per_ch)

    fitting = [d for d in divisors if footprint(d) <= data_budget]
    tc = max(fitting) if fitting else 1

    # Keep enough grid steps so both TCs (v7x) and double-buffering have work.
    target = min(min_steps, b * c)
    while tc > 1 and b * (c // tc) < target:
        tc = max(d for d in divisors if d < tc)
    return tc


# ----------------------------------------------------------------------------
# Wrapper
# ----------------------------------------------------------------------------
def pixel_shuffle_1d(x, factor, *, ch_tile=None, dot_precision=None):
    """x: [B, factor*C, H, W] -> [B, C, H, W*factor] (PixelShuffle1D forward).

    dot_precision: optional lax.Precision for the 0/1 scatter matmuls.  Pass
    lax.Precision.HIGHEST if bit-accurate output is required for arbitrary f32
    data on a backend whose default f32 matmul uses reduced-precision passes.
    """
    b, fc, h, w = x.shape
    assert fc % factor == 0, "channel dim must be divisible by factor"
    assert jnp.issubdtype(x.dtype, jnp.floating), (
        "MXU scatter path requires a floating dtype")
    # TODO(synk): integer / quantized inputs need a non-matmul scatter path.
    c = fc // factor
    wf = w * factor

    # Free metadata view: split channels into (factor, C) so one rectangular
    # block per grid step covers all `factor` source groups of a channel tile.
    x5 = x.reshape(b, factor, c, h, w)

    wc = _pick_w_chunk(w)
    data_budget, vmem_limit = _vmem_budgets()
    if ch_tile is None:
        ch_tile = _pick_channel_tile(b, c, factor, h, w, wc,
                                     x.dtype.itemsize, data_budget)
    assert c % ch_tile == 0
    # TODO(synk): for very large H, additionally split along H (in multiples of 8).

    # Stacked 0/1 scatter matrices  S[f, w, j] = (j == w*factor + f), built once
    # host-side and kept VMEM-resident via a constant index_map (no per-step
    # iota / compare work inside the kernel).
    s_np = np.zeros((factor, wc, wc * factor), np.float32)
    for f in range(factor):
        s_np[f, np.arange(wc), np.arange(wc) * factor + f] = 1.0
    s = jnp.asarray(s_np, dtype=x.dtype)

    grid = (b, c // ch_tile)
    kernel = functools.partial(_ps1d_kernel, factor=factor, w_chunk=wc,
                               dot_precision=dot_precision)
    return pl.pallas_call(
        kernel,
        out_shape=jax.ShapeDtypeStruct((b, c, h, wf), x.dtype),
        grid=grid,
        in_specs=[
            pl.BlockSpec((1, factor, ch_tile, h, w),
                         lambda bi, ci: (bi, 0, ci, 0, 0)),
            pl.BlockSpec((factor, wc, wc * factor),
                         lambda bi, ci: (0, 0, 0)),
        ],
        out_specs=pl.BlockSpec((1, ch_tile, h, wf),
                               lambda bi, ci: (bi, ci, 0, 0)),
        compiler_params=pltpu.CompilerParams(
            dimension_semantics=("parallel", "parallel"),
            vmem_limit_bytes=vmem_limit),
    )(x5, s)


# ----------------------------------------------------------------------------
# Pure-JAX reference (mirrors the PyTorch module exactly)
# ----------------------------------------------------------------------------
def pixel_shuffle_1d_ref(x, factor):
    b, fc, h, w = x.shape
    c = fc // factor
    x = x.reshape(b, factor, c, h, w)
    x = jnp.transpose(x, (0, 2, 3, 4, 1))
    return x.reshape(b, c, h, w * factor)


# ----------------------------------------------------------------------------
if __name__ == "__main__":
    factor = 4
    B, C, H, W = 2, 8, 8, 32          # input channels = factor*C = 32; W*factor = 128 (lane-dense)

    key = jax.random.PRNGKey(0)
    x = jax.random.normal(key, (B, factor * C, H, W), jnp.float32)
    # Snap the test data to the bf16 grid: the kernel's 0/1 scatter matmul is
    # then exact regardless of how many bf16 passes the MXU uses for f32, so
    # the check below can be tight (a wrong permutation would still produce
    # O(1) errors).  For arbitrary f32 data pass dot_precision=HIGHEST.
    x = x.astype(jnp.bfloat16).astype(jnp.float32)

    fwd = jax.jit(functools.partial(pixel_shuffle_1d, factor=factor))
    y = jax.block_until_ready(fwd(x))

    y_ref = pixel_shuffle_1d_ref(x, factor)
    assert y.shape == (B, C, H, W * factor)
    assert bool(jnp.isfinite(y).all())
    max_err = jnp.max(jnp.abs(y - y_ref))
    assert bool(max_err <= 1e-6), f"max abs err {max_err}"
    print("KERNEL_OK")
</pallas_src>

<mosaic_0001>
module attributes {stable_mosaic.version = 11 : i64} {
  func.func @_ps1d_kernel(%arg0: i32, %arg1: i32, %arg2: memref<1x4x4x8x32xf32, #tpu.memory_space<vmem>>, %arg3: memref<4x32x128xf32, #tpu.memory_space<vmem>>, %arg4: memref<1x4x8x128xf32, #tpu.memory_space<vmem>>) attributes {dimension_semantics = [#tpu.dimension_semantics<parallel>, #tpu.dimension_semantics<parallel>], iteration_bounds = array<i64: 2, 2>, scalar_prefetch = 0 : i64, scratch_operands = 0 : i64, tpu.core_type = #tpu.core_type<tc>, window_params = [{transform_indices = @transform_0, window_bounds = array<i64: 1, 4, 4, 8, 32>}, {pipeline_mode = #tpu.pipeline_mode<synchronous>, transform_indices = @transform_1, window_bounds = array<i64: 4, 32, 128>}, {transform_indices = @transform_2, window_bounds = array<i64: 1, 4, 8, 128>}]} {
    %c0 = arith.constant 0 : index
    %c0_0 = arith.constant 0 : index
    %c0_1 = arith.constant 0 : index
    %c0_2 = arith.constant 0 : index
    %c0_3 = arith.constant 0 : index
    %0 = vector.load %arg2[%c0, %c0_0, %c0_1, %c0_2, %c0_3] : memref<1x4x4x8x32xf32, #tpu.memory_space<vmem>>, vector<1x1x4x8x32xf32>
    %1 = vector.shape_cast %0 : vector<1x1x4x8x32xf32> to vector<4x8x32xf32>
    %2 = vector.shape_cast %1 : vector<4x8x32xf32> to vector<32x32xf32>
    %c0_4 = arith.constant 0 : index
    %c0_5 = arith.constant 0 : index
    %c0_6 = arith.constant 0 : index
    %3 = vector.load %arg3[%c0_4, %c0_5, %c0_6] : memref<4x32x128xf32, #tpu.memory_space<vmem>>, vector<1x32x128xf32>
    %4 = vector.shape_cast %3 : vector<1x32x128xf32> to vector<32x128xf32>
    %cst = arith.constant dense<0.000000e+00> : vector<32x128xf32>
    %5 = tpu.matmul %2, %4, %cst {dimension_numbers = #tpu.dot_dimension_numbers<[1], [0], [0], [1], [0, 0, 1, 1], [], []>} : vector<32x32xf32>, vector<32x128xf32>, vector<32x128xf32> -> vector<32x128xf32>
    %6 = vector.shape_cast %5 : vector<32x128xf32> to vector<4x8x128xf32>
    %c0_7 = arith.constant 0 : index
    %c0_8 = arith.constant 0 : index
    %c0_9 = arith.constant 0 : index
    %c0_10 = arith.constant 0 : index
    %7 = vector.load %arg4[%c0_7, %c0_8, %c0_9, %c0_10] : memref<1x4x8x128xf32, #tpu.memory_space<vmem>>, vector<1x4x8x128xf32>
    %8 = vector.shape_cast %7 : vector<1x4x8x128xf32> to vector<4x8x128xf32>
    %9 = vector.shape_cast %6 : vector<4x8x128xf32> to vector<1x4x8x128xf32>
    tpu.vector_store %arg4[%c0_7, %c0_8, %c0_9, %c0_10], %9 {strides = array<i32>} : memref<1x4x8x128xf32, #tpu.memory_space<vmem>>, vector<1x4x8x128xf32>,
    %c0_11 = arith.constant 0 : index
    %c1 = arith.constant 1 : index
    %c0_12 = arith.constant 0 : index
    %c0_13 = arith.constant 0 : index
    %c0_14 = arith.constant 0 : index
    %10 = vector.load %arg2[%c0_11, %c1, %c0_12, %c0_13, %c0_14] : memref<1x4x4x8x32xf32, #tpu.memory_space<vmem>>, vector<1x1x4x8x32xf32>
    %11 = vector.shape_cast %10 : vector<1x1x4x8x32xf32> to vector<4x8x32xf32>
    %12 = vector.shape_cast %11 : vector<4x8x32xf32> to vector<32x32xf32>
    %c1_15 = arith.constant 1 : index
    %c0_16 = arith.constant 0 : index
    %c0_17 = arith.constant 0 : index
    %13 = vector.load %arg3[%c1_15, %c0_16, %c0_17] : memref<4x32x128xf32, #tpu.memory_space<vmem>>, vector<1x32x128xf32>
    %14 = vector.shape_cast %13 : vector<1x32x128xf32> to vector<32x128xf32>
    %cst_18 = arith.constant dense<0.000000e+00> : vector<32x128xf32>
    %15 = tpu.matmul %12, %14, %cst_18 {dimension_numbers = #tpu.dot_dimension_numbers<[1], [0], [0], [1], [0, 0, 1, 1], [], []>} : vector<32x32xf32>, vector<32x128xf32>, vector<32x128xf32> -> vector<32x128xf32>
    %16 = vector.shape_cast %15 : vector<32x128xf32> to vector<4x8x128xf32>
    %c0_19 = arith.constant 0 : index
    %c0_20 = arith.constant 0 : index
    %c0_21 = arith.constant 0 : index
    %c0_22 = arith.constant 0 : index
    %17 = vector.load %arg4[%c0_19, %c0_20, %c0_21, %c0_22] : memref<1x4x8x128xf32, #tpu.memory_space<vmem>>, vector<1x4x8x128xf32>
    %18 = vector.shape_cast %17 : vector<1x4x8x128xf32> to vector<4x8x128xf32>
    %19 = arith.addf %18, %16 : vector<4x8x128xf32>
    %c0_23 = arith.constant 0 : index
    %c0_24 = arith.constant 0 : index
    %c0_25 = arith.constant 0 : index
    %c0_26 = arith.constant 0 : index
    %20 = vector.load %arg4[%c0_23, %c0_24, %c0_25, %c0_26] : memref<1x4x8x128xf32, #tpu.memory_space<vmem>>, vector<1x4x8x128xf32>
    %21 = vector.shape_cast %20 : vector<1x4x8x128xf32> to vector<4x8x128xf32>
    %22 = vector.shape_cast %19 : vector<4x8x128xf32> to vector<1x4x8x128xf32>
    tpu.vector_store %arg4[%c0_23, %c0_24, %c0_25, %c0_26], %22 {strides = array<i32>} : memref<1x4x8x128xf32, #tpu.memory_space<vmem>>, vector<1x4x8x128xf32>,
    %c0_27 = arith.constant 0 : index
    %c2 = arith.constant 2 : index
    %c0_28 = arith.constant 0 : index
    %c0_29 = arith.constant 0 : index
    %c0_30 = arith.constant 0 : index
    %23 = vector.load %arg2[%c0_27, %c2, %c0_28, %c0_29, %c0_30] : memref<1x4x4x8x32xf32, #tpu.memory_space<vmem>>, vector<1x1x4x8x32xf32>
    %24 = vector.shape_cast %23 : vector<1x1x4x8x32xf32> to vector<4x8x32xf32>
    %25 = vector.shape_cast %24 : vector<4x8x32xf32> to vector<32x32xf32>
    %c2_31 = arith.constant 2 : index
    %c0_32 = arith.constant 0 : index
    %c0_33 = arith.constant 0 : index
    %26 = vector.load %arg3[%c2_31, %c0_32, %c0_33] : memref<4x32x128xf32, #tpu.memory_space<vmem>>, vector<1x32x128xf32>
    %27 = vector.shape_cast %26 : vector<1x32x128xf32> to vector<32x128xf32>
    %cst_34 = arith.constant dense<0.000000e+00> : vector<32x128xf32>
    %28 = tpu.matmul %25, %27, %cst_34 {dimension_numbers = #tpu.dot_dimension_numbers<[1], [0], [0], [1], [0, 0, 1, 1], [], []>} : vector<32x32xf32>, vector<32x128xf32>, vector<32x128xf32> -> vector<32x128xf32>
    %29 = vector.shape_cast %28 : vector<32x128xf32> to vector<4x8x128xf32>
    %c0_35 = arith.constant 0 : index
    %c0_36 = arith.constant 0 : index
    %c0_37 = arith.constant 0 : index
    %c0_38 = arith.constant 0 : index
    %30 = vector.load %arg4[%c0_35, %c0_36, %c0_37, %c0_38] : memref<1x4x8x128xf32, #tpu.memory_space<vmem>>, vector<1x4x8x128xf32>
    %31 = vector.shape_cast %30 : vector<1x4x8x128xf32> to vector<4x8x128xf32>
    %32 = arith.addf %31, %29 : vector<4x8x128xf32>
    %c0_39 = arith.constant 0 : index
    %c0_40 = arith.constant 0 : index
    %c0_41 = arith.constant 0 : index
    %c0_42 = arith.constant 0 : index
    %33 = vector.load %arg4[%c0_39, %c0_40, %c0_41, %c0_42] : memref<1x4x8x128xf32, #tpu.memory_space<vmem>>, vector<1x4x8x128xf32>
    %34 = vector.shape_cast %33 : vector<1x4x8x128xf32> to vector<4x8x128xf32>
    %35 = vector.shape_cast %32 : vector<4x8x128xf32> to vector<1x4x8x128xf32>
    tpu.vector_store %arg4[%c0_39, %c0_40, %c0_41, %c0_42], %35 {strides = array<i32>} : memref<1x4x8x128xf32, #tpu.memory_space<vmem>>, vector<1x4x8x128xf32>,
    %c0_43 = arith.constant 0 : index
    %c3 = arith.constant 3 : index
    %c0_44 = arith.constant 0 : index
    %c0_45 = arith.constant 0 : index
    %c0_46 = arith.constant 0 : index
    %36 = vector.load %arg2[%c0_43, %c3, %c0_44, %c0_45, %c0_46] : memref<1x4x4x8x32xf32, #tpu.memory_space<vmem>>, vector<1x1x4x8x32xf32>
    %37 = vector.shape_cast %36 : vector<1x1x4x8x32xf32> to vector<4x8x32xf32>
    %38 = vector.shape_cast %37 : vector<4x8x32xf32> to vector<32x32xf32>
    %c3_47 = arith.constant 3 : index
    %c0_48 = arith.constant 0 : index
    %c0_49 = arith.constant 0 : index
    %39 = vector.load %arg3[%c3_47, %c0_48, %c0_49] : memref<4x32x128xf32, #tpu.memory_space<vmem>>, vector<1x32x128xf32>
    %40 = vector.shape_cast %39 : vector<1x32x128xf32> to vector<32x128xf32>
    %cst_50 = arith.constant dense<0.000000e+00> : vector<32x128xf32>
    %41 = tpu.matmul %38, %40, %cst_50 {dimension_numbers = #tpu.dot_dimension_numbers<[1], [0], [0], [1], [0, 0, 1, 1], [], []>} : vector<32x32xf32>, vector<32x128xf32>, vector<32x128xf32> -> vector<32x128xf32>
    %42 = vector.shape_cast %41 : vector<32x128xf32> to vector<4x8x128xf32>
    %c0_51 = arith.constant 0 : index
    %c0_52 = arith.constant 0 : index
    %c0_53 = arith.constant 0 : index
    %c0_54 = arith.constant 0 : index
    %43 = vector.load %arg4[%c0_51, %c0_52, %c0_53, %c0_54] : memref<1x4x8x128xf32, #tpu.memory_space<vmem>>, vector<1x4x8x128xf32>
    %44 = vector.shape_cast %43 : vector<1x4x8x128xf32> to vector<4x8x128xf32>
    %45 = arith.addf %44, %42 : vector<4x8x128xf32>
    %c0_55 = arith.constant 0 : index
    %c0_56 = arith.constant 0 : index
    %c0_57 = arith.constant 0 : index
    %c0_58 = arith.constant 0 : index
    %46 = vector.load %arg4[%c0_55, %c0_56, %c0_57, %c0_58] : memref<1x4x8x128xf32, #tpu.memory_space<vmem>>, vector<1x4x8x128xf32>
    %47 = vector.shape_cast %46 : vector<1x4x8x128xf32> to vector<4x8x128xf32>
    %48 = vector.shape_cast %45 : vector<4x8x128xf32> to vector<1x4x8x128xf32>
    tpu.vector_store %arg4[%c0_55, %c0_56, %c0_57, %c0_58], %48 {strides = array<i32>} : memref<1x4x8x128xf32, #tpu.memory_space<vmem>>, vector<1x4x8x128xf32>,
    return
  }
  func.func @transform_0(%arg0: i32, %arg1: i32) -> (i32, i32, i32, i32, i32) {
    %c0_i32 = arith.constant 0 : i32
    %c0_i32_0 = arith.constant 0 : i32
    %c0_i32_1 = arith.constant 0 : i32
    %c0_i32_2 = arith.constant 0 : i32
    return %arg0, %c0_i32, %arg1, %c0_i32_0, %c0_i32_1 : i32, i32, i32, i32, i32
  }
  func.func @transform_1(%arg0: i32, %arg1: i32) -> (i32, i32, i32) {
    %c0_i32 = arith.constant 0 : i32
    %c0_i32_0 = arith.constant 0 : i32
    %c0_i32_1 = arith.constant 0 : i32
    %c0_i32_2 = arith.constant 0 : i32
    return %c0_i32, %c0_i32_0, %c0_i32_1 : i32, i32, i32
  }
  func.func @transform_2(%arg0: i32, %arg1: i32) -> (i32, i32, i32, i32) {
    %c0_i32 = arith.constant 0 : i32
    %c0_i32_0 = arith.constant 0 : i32
    %c0_i32_1 = arith.constant 0 : i32
    return %arg0, %arg1, %c0_i32, %c0_i32_0 : i32, i32, i32, i32
  }
}

</mosaic_0001>

<llo_original>
// kernel: pixel_shuffle_1d.1
$region0: #{pixel_shuffle_1d.1}
  #allocation0 [shape = 'u32[]', space=smem, size = 0x4, offset = 0x4, fixed_abs, tag = 'smem constant byte address 0x4 - core index']
  #allocation1 [shape = 'u32[144,128]{1,0:T(1,128)}', space=vmem, size = 0x12000, scoped, tag = 'internal scratch']
  #allocation8 [shape = 's32[]', space=sflag, size = 0x4, offset = 0, fixed_abs, tag = 'sflag constant byte address 0x0 - dummy sync flag']
  %s0 = inlined_call_operand.hbm [shape: f32[2,4,8,8,32], index: 0, kind: input, shape index: {}]
  %s1 = inlined_call_operand.hbm [shape: f32[4,32,128], index: 1, kind: input, shape index: {}]
  %s2 = inlined_call_operand.hbm [shape: f32[2,8,8,128], index: 2, kind: output, shape index: {}]
  %s3 = sld [smem:[#allocation0]]
  $region49: #{pixel_shuffle_1d.1} parent=0
    _
  %s5 = ssub.s32 1, %s3
  %s6 = scalar_select 0, %s5, %s3
  $region1: #{pixel_shuffle_1d.1} parent=0
    #allocation2 [shape = 'u8[131072]{0}', space=vmem, size = 0x20000, scoped, tag = 'input window, operand 0']
    #allocation3 [shape = 's32[2]{0}', space=sflag, size = 0x8, scoped, tag = 'scoped memory for pixel_shuffle_1d.1']
    #allocation4 [shape = 's32[2]{0}', space=sflag, size = 0x8, scoped, tag = 'scoped memory for pixel_shuffle_1d.1']
    #allocation5 [shape = 'u8[65536]{0}', space=vmem, size = 0x10000, scoped, tag = 'input window, operand 1, single buffered']
    #allocation6 [shape = 's32[1]{0}', space=sflag, size = 0x4, scoped, tag = 'scoped memory for pixel_shuffle_1d.1']
    #allocation7 [shape = 'u8[32768]{0}', space=vmem, size = 0x8000, scoped, tag = 'output window, operand 0']
    %7 = vsyncpa [#allocation3], 0
    %s8 = scalar_lea.sflag [#allocation3], 1
    %9 = vsyncpa %s8, 0
    %10 = vsyncpa [#allocation6], 0
    %11 = vsyncpa [#allocation4], 0
    %s12 = scalar_lea.sflag [#allocation4], 1
    %13 = vsyncpa %s12, 0
    loop: start=0, step=1, limit=6
    $region2: #{pixel_shuffle_1d.1} parent=1 // loop_pre_header
      _
    $region3: #{pixel_shuffle_1d.1} parent=1 // loop_header
      %s15 = sphi 0, %s19
      %p16 = scmp.ge.s32.totalorder %s15, 6
      %s22 = sphi 0, %s34
      %s23 = sphi 0, %s30
      %s24 = sphi 0, %s22
      %s25 = sphi 0, %s23
      %s26 = sphi 0, %s24
      %s27 = sphi 0, %s25
      %s39 = sphi 0, %s41
      %s42 = sphi 0, %s39
      %s43 = sphi 0, %s42
      %s59 = sphi 0, %s43
      %s63 = sphi 0, %s63
      %s65 = sphi 0, %s63
      %s66 = sphi 0, %s65
      %s80 = sphi 0, %s66
      %s88 = sphi 0, %s90
      %s91 = sphi 0, %s88
      %s92 = sphi 0, %s91
      %s108 = sphi 0, %s92
    $region4: #{pixel_shuffle_1d.1} parent=1 // loop_header_branch
      %18 = sbr.rel (%p16) target = $region8
    $region5: #{pixel_shuffle_1d.1} parent=1 // loop_body
      %s20 = ssub.s32 %s15, 1
      %s21 = ssub.s32 %s15, 2
      %s28 = sadd.s32 1, %s23
      %p29 = scmp.ge.s32.totalorder %s28, 2
      %s30 = scalar_select %p29, 0, %s28
      %s31 = sadd.s32 1, %s22
      %s32 = scalar_select %p29, %s31, %s22
      %p33 = scmp.ge.s32.totalorder %s32, 2
      %s34 = scalar_select %p33, 0, %s32
      %s35 = ssub.s32 %s22, %s34
      %s36 = ssub.s32 %s23, %s30
      %s37 = sor.u32 %s35, %s36
      %p38 = scmp.eq.s32.totalorder %s37, 0
      %s40 = sadd.s32 %s39, 1
      %s41 = scalar_select %p38, %s39, %s40
      %p44 = pneg %p38
      %p45 = scmp.eq.s32.totalorder %s15, 3
      %p46 = por %p44, %p45
      %p47 = scmp.ne.s32.totalorder %s39, %s42
      %p48 = scmp.eq.s32.totalorder %s15, 0
      %p49 = por %p47, %p48
      %p50 = scmp.ne.s32.totalorder %s39, %s42
      %p51 = scmp.eq.s32.totalorder %s20, 3
      %p52 = por %p50, %p51
      %p53 = scmp.ne.s32.totalorder %s42, %s43
      %p54 = scmp.eq.s32.totalorder %s20, 0
      %p55 = por %p53, %p54
      %p56 = scmp.ne.s32.totalorder %s42, %s43
      %p57 = scmp.eq.s32.totalorder %s21, 3
      %p58 = por %p56, %p57
      %p60 = scmp.ne.s32.totalorder %s43, %s59
      %p61 = scmp.eq.s32.totalorder %s21, 0
      %p62 = por %p60, %p61
      %s64 = sadd.s32 %s63, 1
      %p67 = scmp.eq.s32.totalorder %s15, 3
      %p68 = scmp.ne.s32.totalorder %s63, %s65
      %p69 = scmp.eq.s32.totalorder %s15, 0
      %p70 = por %p68, %p69
      %p71 = scmp.ne.s32.totalorder %s63, %s65
      %p72 = scmp.eq.s32.totalorder %s20, 3
      %p73 = por %p71, %p72
      %p74 = scmp.ne.s32.totalorder %s65, %s66
      %p75 = scmp.eq.s32.totalorder %s20, 0
      %p76 = por %p74, %p75
      %p77 = scmp.ne.s32.totalorder %s65, %s66
      %p78 = scmp.eq.s32.totalorder %s21, 3
      %p79 = por %p77, %p78
      %p81 = scmp.ne.s32.totalorder %s66, %s80
      %p82 = scmp.eq.s32.totalorder %s21, 0
      %p83 = por %p81, %p82
      %s84 = ssub.s32 %s22, %s34
      %s85 = ssub.s32 %s23, %s30
      %s86 = sor.u32 %s84, %s85
      %p87 = scmp.eq.s32.totalorder %s86, 0
      %s89 = sadd.s32 %s88, 1
      %s90 = scalar_select %p87, %s88, %s89
      %p93 = pneg %p87
      %p94 = scmp.eq.s32.totalorder %s15, 3
      %p95 = por %p93, %p94
      %p96 = scmp.ne.s32.totalorder %s88, %s91
      %p97 = scmp.eq.s32.totalorder %s15, 0
      %p98 = por %p96, %p97
      %p99 = scmp.ne.s32.totalorder %s88, %s91
      %p100 = scmp.eq.s32.totalorder %s20, 3
      %p101 = por %p99, %p100
      %p102 = scmp.ne.s32.totalorder %s91, %s92
      %p103 = scmp.eq.s32.totalorder %s20, 0
      %p104 = por %p102, %p103
      %p105 = scmp.ne.s32.totalorder %s91, %s92
      %p106 = scmp.eq.s32.totalorder %s21, 3
      %p107 = por %p105, %p106
      %p109 = scmp.ne.s32.totalorder %s92, %s108
      %p110 = scmp.eq.s32.totalorder %s21, 0
      %p111 = por %p109, %p110
      %p112 = scmp.le.s32.totalorder 1, %s15
      %p113 = scmp.lt.s32.totalorder %s15, 5
      %p114 = pnand %p112, %p113
      %p115 = pneg %p114
      // Predicated region
      $region9: #{pixel_shuffle_1d.1} parent=5 // pred_check
        _
      $region10: #{pixel_shuffle_1d.1} parent=5 // pred_check_branch
        %117 = sbr.rel (%p114) target = $region12
      $region11: #{pixel_shuffle_1d.1} parent=5 // pred_region
        %s118 = ssub.s32 %s15, 1
        // Predicated region
        $region13: #{pixel_shuffle_1d.1} parent=11 // pred_check
          %p119 = pneg %p76
        $region14: #{pixel_shuffle_1d.1} parent=11 // pred_check_branch
          %121 = sbr.rel (%p119) target = $region16
        $region15: #{pixel_shuffle_1d.1} parent=11 // pred_region
          %s123 = ssub.s32 2048, 2048
          %124 = vsyncadd [#allocation6], %s123
          %s125 = sshll.u32 [#allocation5], 4
          %s126 = int_to_ptr.vmem [resolvable:$true] %s125
          %131 = dma.hbm_to_vmem [thread:$0]  %s1, 2048, %s126, [#allocation6], 128, 128, 8
        $region16: #{pixel_shuffle_1d.1} parent=11 // pred_fallthru
          _
      $region12: #{pixel_shuffle_1d.1} parent=5 // pred_fallthru
        _
      %p132 = scmp.lt.s32.totalorder %s15, 4
      // Predicated region
      $region17: #{pixel_shuffle_1d.1} parent=5 // pred_check
        %p133 = pneg %p132
      $region18: #{pixel_shuffle_1d.1} parent=5 // pred_check_branch
        %135 = sbr.rel (%p133) target = $region20
      $region19: #{pixel_shuffle_1d.1} parent=5 // pred_region
        // Predicated region
        $region21: #{pixel_shuffle_1d.1} parent=19 // pred_check
          %p136 = pneg %p49
        $region22: #{pixel_shuffle_1d.1} parent=19 // pred_check_branch
          %138 = sbr.rel (%p136) target = $region24
        $region23: #{pixel_shuffle_1d.1} parent=19 // pred_region
          #allocation9 [shape = 'u32[6]{0}', space=smem, size = 0x18, scoped, tag = 'DMA stride descriptor']
          %s139 = sand.u32 %s39, 1
          %s140 = scalar_lea.sflag [#allocation3], %s139
          %s141 = sand.u32 %s39, 1
          %s142 = smul.addr %s141, 128
          %s143 = scalar_lea.vmem [#allocation2], %s142
          %s144 = smul.u32 4, %s23
          %s146 = ssub.s32 2048, 2048
          %147 = vsyncadd %s140, %s146
          %s148 = smul.addr %s22, 32
          %s149 = sadd.s32 %s144, %s148
          %s150 = smul.addr %s149, 128
          %s151 = scalar_lea.hbm %s0, %s150
          %s153 = sshll.u32 1, 14
          %s154 = sxor.u32 4294967295, %s153
          %s156 = sld [smem:[#allocation0]]
          %s157 = sadd.s32 2, %s156
          %s159 = sshll.u32 7, 26
          %s160 = sxor.u32 4294967295, %s159
          %s161 = sand.u32 0, %s160
          %s162 = sshll.u32 %s157, 26
          %s163 = sor.u32 %s161, %s162
          %s164 = sshll.u32 %s143, 4
          %s165 = int_to_ptr.vmem [resolvable:$true] %s164
          %171 = sst [smem:[#allocation9]] 1024
          %s172 = scalar_lea.smem [#allocation9], 1
          %173 = sst [smem:[%s172]] 512
          %s174 = scalar_lea.smem [#allocation9], 2
          %175 = sst [smem:[%s174]] 4
          %s176 = scalar_lea.smem [#allocation9], 3
          %177 = sst [smem:[%s176]] 128
          %s178 = scalar_lea.smem [#allocation9], 4
          %179 = sst [smem:[%s178]] 128
          %s180 = scalar_lea.smem [#allocation9], 5
          %181 = sst [smem:[%s180]] 8
          %183 = dma.general %s151, 2048, %s165, %s140, 131072, [#allocation9], %s163, 0
        $region24: #{pixel_shuffle_1d.1} parent=19 // pred_fallthru
          _
      $region20: #{pixel_shuffle_1d.1} parent=5 // pred_fallthru
        _
      %p184 = scmp.le.s32.totalorder 1, %s15
      %p185 = scmp.lt.s32.totalorder %s15, 5
      %p186 = pnand %p184, %p185
      %p187 = pneg %p186
      // Predicated region
      $region25: #{pixel_shuffle_1d.1} parent=5 // pred_check
        _
      $region26: #{pixel_shuffle_1d.1} parent=5 // pred_check_branch
        %189 = sbr.rel (%p186) target = $region28
      $region27: #{pixel_shuffle_1d.1} parent=5 // pred_region
        %s190 = ssub.s32 %s15, 1
        %s191 = sand.u32 %s42, 1
        %s192 = scalar_lea.sflag [#allocation3], %s191
        %s193 = sand.u32 %s42, 1
        %s194 = smul.addr %s193, 128
        %s195 = scalar_lea.vmem [#allocation2], %s194
        // Predicated region
        $region29: #{pixel_shuffle_1d.1} parent=27 // pred_check
          %p196 = pneg %p55
        $region30: #{pixel_shuffle_1d.1} parent=27 // pred_check_branch
          %198 = sbr.rel (%p196) target = $region32
        $region31: #{pixel_shuffle_1d.1} parent=27 // pred_region
          %199 = dma.done %s192, 2048
        $region32: #{pixel_shuffle_1d.1} parent=27 // pred_fallthru
          _
        // Predicated region
        $region33: #{pixel_shuffle_1d.1} parent=27 // pred_check
          %p200 = pneg %p76
        $region34: #{pixel_shuffle_1d.1} parent=27 // pred_check_branch
          %202 = sbr.rel (%p200) target = $region36
        $region35: #{pixel_shuffle_1d.1} parent=27 // pred_region
          %203 = dma.done [#allocation6], 2048
        $region36: #{pixel_shuffle_1d.1} parent=27 // pred_fallthru
          _
        %s204 = sand.u32 %s42, 1
        %s205 = scalar_lea.sflag [#allocation3], %s204
        %s206 = sand.u32 %s42, 1
        %s207 = smul.addr %s206, 128
        %s208 = scalar_lea.vmem [#allocation2], %s207
        %p209 = pneg %p55
        %p210 = pneg %p52
        %p211 = pneg %p76
        %p212 = pneg %p73
        %p213 = pneg %p104
        %p214 = pneg %p101
        %s215 = sand.u32 %s91, 1
        %s216 = scalar_lea.sflag [#allocation4], %s215
        %s217 = sand.u32 %s91, 1
        %s218 = smul.addr %s217, 32
        %s219 = scalar_lea.vmem [#allocation7], %s218
        %s220 = smul.u32 4, %s25
        %s221 = smul.u32 4, %s25
        %v222 = vld [vmem:[%s195] sm:$0xff]
        %v223 = vld [vmem:[%s195 + $0x8] sm:$0xff]
        %v224 = vld [vmem:[%s195 + $0x10] sm:$0xff]
        %v225 = vld [vmem:[%s195 + $0x18] sm:$0xff]
        %v226 = vld [vmem:[#allocation5] sm:$0xff]
        %v227 = vld [vmem:[#allocation5 + $0x8] sm:$0xff]
        %v228 = vld [vmem:[#allocation5 + $0x10] sm:$0xff]
        %v229 = vld [vmem:[#allocation5 + $0x18] sm:$0xff]
        %vm230 = vcmask 261120
        %v232 = vsel %vm230, %v222, 0
        %v235 = vsel %vm230, %v223, 0
        %v238 = vsel %vm230, %v224, 0
        %v241 = vsel %vm230, %v225, 0
        %243 = vmatprep.subr.mxu0 0.0
        %244 = vmatpush1.msra.mxu0 0.0
        %245 = vmatprep.subr.mxu0 0.0
        %246 = vmatpush1.msra.mxu0 0.0
        %247 = vmatprep.subr.mxu0 0.0
        %248 = vmatpush1.msra.mxu0 0.0
        %249 = vmatprep.subr.mxu0 0.0
        %250 = vmatpush1.msra.mxu0 0.0
        %251 = vmatprep.subr.mxu0 0.0
        %252 = vmatpush1.msra.mxu0 0.0
        %253 = vmatprep.subr.mxu0 0.0
        %254 = vmatpush1.msra.mxu0 0.0
        %255 = vmatprep.subr.mxu0 0.0
        %256 = vmatpush1.msra.mxu0 0.0
        %257 = vmatprep.subr.mxu0 0.0
        %258 = vmatpush1.msra.mxu0 0.0
        %259 = vmatprep.subr.mxu0 0.0
        %260 = vmatpush1.msra.mxu0 0.0
        %261 = vmatprep.subr.mxu0 0.0
        %262 = vmatpush1.msra.mxu0 0.0
        %263 = vmatprep.subr.mxu0 0.0
        %264 = vmatpush1.msra.mxu0 0.0
        %265 = vmatprep.subr.mxu0 0.0
        %266 = vmatpush1.msra.mxu0 0.0
        %267 = vmatprep.subr.mxu0 0.0
        %268 = vmatpush1.msra.mxu0 %v229
        %269 = vmatprep.subr.mxu0 0.0
        %270 = vmatpush1.msra.mxu0 %v228
        %271 = vmatprep.subr.mxu0 0.0
        %272 = vmatpush1.msra.mxu0 %v227
        %273 = vmatprep.subr.mxu0 0.0
        %274 = vmatpush1.msra.mxu0 %v226
        %275 = vmatprep.subr.mxu0 0.0
        %276 = vmatpush2.msra.mxu0 0.0
        %277 = vmatprep.subr.mxu0 0.0
        %278 = vmatpush2.msra.mxu0 0.0
        %279 = vmatprep.subr.mxu0 0.0
        %280 = vmatpush2.msra.mxu0 0.0
        %281 = vmatprep.subr.mxu0 0.0
        %282 = vmatpush2.msra.mxu0 0.0
        %283 = vmatprep.subr.mxu0 0.0
        %284 = vmatpush2.msra.mxu0 0.0
        %285 = vmatprep.subr.mxu0 0.0
        %286 = vmatpush2.msra.mxu0 0.0
        %287 = vmatprep.subr.mxu0 0.0
        %288 = vmatpush2.msra.mxu0 0.0
        %289 = vmatprep.subr.mxu0 0.0
        %290 = vmatpush2.msra.mxu0 0.0
        %291 = vmatprep.subr.mxu0 0.0
        %292 = vmatpush2.msra.mxu0 0.0
        %293 = vmatprep.subr.mxu0 0.0
        %294 = vmatpush2.msra.mxu0 0.0
        %295 = vmatprep.subr.mxu0 0.0
        %296 = vmatpush2.msra.mxu0 0.0
        %297 = vmatprep.subr.mxu0 0.0
        %298 = vmatpush2.msra.mxu0 0.0
        %299 = vmatprep.subr.mxu0 0.0
        %300 = vmatpush2.msra.mxu0 0.0
        %301 = vmatprep.subr.mxu0 0.0
        %302 = vmatpush2.msra.mxu0 0.0
        %303 = vmatprep.subr.mxu0 0.0
        %304 = vmatpush2.msra.mxu0 0.0
        %305 = vmatprep.subr.mxu0 0.0
        %306 = vmatpush2.msra.mxu0 0.0
        %307 = vmatprep.mubr.f32.mxu0 0.0
        %308 = vmatmul.mubr.f32.gmra.mxu0 %v232
        %v309 = vpop.f32.mrf.mxu0
        %v310 = vadd.f32 0.0, %v309
        %v311 = vpop.f32.mrf.mxu0
        %312 = vmatprep.mubr.f32.mxu0 0.0
        %313 = vmatmul.mubr.f32.gmra.mxu0 %v235
        %v314 = vpop.f32.mrf.mxu0
        %v315 = vadd.f32 0.0, %v314
        %v316 = vpop.f32.mrf.mxu0
        %317 = vmatprep.mubr.f32.mxu0 0.0
        %318 = vmatmul.mubr.f32.gmra.mxu0 %v238
        %v319 = vpop.f32.mrf.mxu0
        %v320 = vadd.f32 0.0, %v319
        %v321 = vpop.f32.mrf.mxu0
        %322 = vmatprep.mubr.f32.mxu0 0.0
        %323 = vmatmul.mubr.f32.gmra.mxu0 %v241
        %v324 = vpop.f32.mrf.mxu0
        %v325 = vadd.f32 0.0, %v324
        %v326 = vpop.f32.mrf.mxu0
        %327 = vdwg.mxu0
        %328 = vst [vmem:[%s219] sm:$0xff] %v310
        %329 = vst [vmem:[%s219 + $0x8] sm:$0xff] %v315
        %330 = vst [vmem:[%s219 + $0x10] sm:$0xff] %v320
        %331 = vst [vmem:[%s219 + $0x18] sm:$0xff] %v325
        %s332 = scalar_lea.vmem %s195, 32 [#allocation2]
        %v333 = vld [vmem:[%s332] sm:$0xff]
        %v334 = vld [vmem:[%s332 + $0x8] sm:$0xff]
        %v335 = vld [vmem:[%s332 + $0x10] sm:$0xff]
        %v336 = vld [vmem:[%s332 + $0x18] sm:$0xff]
        %s337 = scalar_lea.vmem [#allocation5], 32
        %v338 = vld [vmem:[%s337] sm:$0xff]
        %v339 = vld [vmem:[%s337 + $0x8] sm:$0xff]
        %v340 = vld [vmem:[%s337 + $0x10] sm:$0xff]
        %v341 = vld [vmem:[%s337 + $0x18] sm:$0xff]
        %v343 = vsel %vm230, %v333, 0
        %v346 = vsel %vm230, %v334, 0
        %v349 = vsel %vm230, %v335, 0
        %v352 = vsel %vm230, %v336, 0
        %354 = vmatprep.subr.mxu0 0.0
        %355 = vmatpush1.msra.mxu0 0.0
        %356 = vmatprep.subr.mxu0 0.0
        %357 = vmatpush1.msra.mxu0 0.0
        %358 = vmatprep.subr.mxu0 0.0
        %359 = vmatpush1.msra.mxu0 0.0
        %360 = vmatprep.subr.mxu0 0.0
        %361 = vmatpush1.msra.mxu0 0.0
        %362 = vmatprep.subr.mxu0 0.0
        %363 = vmatpush1.msra.mxu0 0.0
        %364 = vmatprep.subr.mxu0 0.0
        %365 = vmatpush1.msra.mxu0 0.0
        %366 = vmatprep.subr.mxu0 0.0
        %367 = vmatpush1.msra.mxu0 0.0
        %368 = vmatprep.subr.mxu0 0.0
        %369 = vmatpush1.msra.mxu0 0.0
        %370 = vmatprep.subr.mxu0 0.0
        %371 = vmatpush1.msra.mxu0 0.0
        %372 = vmatprep.subr.mxu0 0.0
        %373 = vmatpush1.msra.mxu0 0.0
        %374 = vmatprep.subr.mxu0 0.0
        %375 = vmatpush1.msra.mxu0 0.0
        %376 = vmatprep.subr.mxu0 0.0
        %377 = vmatpush1.msra.mxu0 0.0
        %378 = vmatprep.subr.mxu0 0.0
        %379 = vmatpush1.msra.mxu0 %v341
        %380 = vmatprep.subr.mxu0 0.0
        %381 = vmatpush1.msra.mxu0 %v340
        %382 = vmatprep.subr.mxu0 0.0
        %383 = vmatpush1.msra.mxu0 %v339
        %384 = vmatprep.subr.mxu0 0.0
        %385 = vmatpush1.msra.mxu0 %v338
        %386 = vmatprep.subr.mxu0 0.0
        %387 = vmatpush2.msra.mxu0 0.0
        %388 = vmatprep.subr.mxu0 0.0
        %389 = vmatpush2.msra.mxu0 0.0
        %390 = vmatprep.subr.mxu0 0.0
        %391 = vmatpush2.msra.mxu0 0.0
        %392 = vmatprep.subr.mxu0 0.0
        %393 = vmatpush2.msra.mxu0 0.0
        %394 = vmatprep.subr.mxu0 0.0
        %395 = vmatpush2.msra.mxu0 0.0
        %396 = vmatprep.subr.mxu0 0.0
        %397 = vmatpush2.msra.mxu0 0.0
        %398 = vmatprep.subr.mxu0 0.0
        %399 = vmatpush2.msra.mxu0 0.0
        %400 = vmatprep.subr.mxu0 0.0
        %401 = vmatpush2.msra.mxu0 0.0
        %402 = vmatprep.subr.mxu0 0.0
        %403 = vmatpush2.msra.mxu0 0.0
        %404 = vmatprep.subr.mxu0 0.0
        %405 = vmatpush2.msra.mxu0 0.0
        %406 = vmatprep.subr.mxu0 0.0
        %407 = vmatpush2.msra.mxu0 0.0
        %408 = vmatprep.subr.mxu0 0.0
        %409 = vmatpush2.msra.mxu0 0.0
        %410 = vmatprep.subr.mxu0 0.0
        %411 = vmatpush2.msra.mxu0 0.0
        %412 = vmatprep.subr.mxu0 0.0
        %413 = vmatpush2.msra.mxu0 0.0
        %414 = vmatprep.subr.mxu0 0.0
        %415 = vmatpush2.msra.mxu0 0.0
        %416 = vmatprep.subr.mxu0 0.0
        %417 = vmatpush2.msra.mxu0 0.0
        %418 = vmatprep.mubr.f32.mxu0 0.0
        %419 = vmatmul.mubr.f32.gmra.mxu0 %v343
        %v420 = vpop.f32.mrf.mxu0
        %v421 = vadd.f32 0.0, %v420
        %v422 = vpop.f32.mrf.mxu0
        %423 = vmatprep.mubr.f32.mxu0 0.0
        %424 = vmatmul.mubr.f32.gmra.mxu0 %v346
        %v425 = vpop.f32.mrf.mxu0
        %v426 = vadd.f32 0.0, %v425
        %v427 = vpop.f32.mrf.mxu0
        %428 = vmatprep.mubr.f32.mxu0 0.0
        %429 = vmatmul.mubr.f32.gmra.mxu0 %v349
        %v430 = vpop.f32.mrf.mxu0
        %v431 = vadd.f32 0.0, %v430
        %v432 = vpop.f32.mrf.mxu0
        %433 = vmatprep.mubr.f32.mxu0 0.0
        %434 = vmatmul.mubr.f32.gmra.mxu0 %v352
        %v435 = vpop.f32.mrf.mxu0
        %v436 = vadd.f32 0.0, %v435
        %v437 = vpop.f32.mrf.mxu0
        %438 = vdwg.mxu0
        %v439 = vld [vmem:[%s219] sm:$0xff]
        %v440 = vld [vmem:[%s219 + $0x8] sm:$0xff]
        %v441 = vld [vmem:[%s219 + $0x10] sm:$0xff]
        %v442 = vld [vmem:[%s219 + $0x18] sm:$0xff]
        %v443 = vadd.f32 %v439, %v421
        %v444 = vadd.f32 %v440, %v426
        %v445 = vadd.f32 %v441, %v431
        %v446 = vadd.f32 %v442, %v436
        %447 = vst [vmem:[%s219] sm:$0xff] %v443
        %448 = vst [vmem:[%s219 + $0x8] sm:$0xff] %v444
        %449 = vst [vmem:[%s219 + $0x10] sm:$0xff] %v445
        %450 = vst [vmem:[%s219 + $0x18] sm:$0xff] %v446
        %s451 = scalar_lea.vmem %s195, 64 [#allocation2]
        %v452 = vld [vmem:[%s451] sm:$0xff]
        %v453 = vld [vmem:[%s451 + $0x8] sm:$0xff]
        %v454 = vld [vmem:[%s451 + $0x10] sm:$0xff]
        %v455 = vld [vmem:[%s451 + $0x18] sm:$0xff]
        %s456 = scalar_lea.vmem [#allocation5], 64
        %v457 = vld [vmem:[%s456] sm:$0xff]
        %v458 = vld [vmem:[%s456 + $0x8] sm:$0xff]
        %v459 = vld [vmem:[%s456 + $0x10] sm:$0xff]
        %v460 = vld [vmem:[%s456 + $0x18] sm:$0xff]
        %v462 = vsel %vm230, %v452, 0
        %v465 = vsel %vm230, %v453, 0
        %v468 = vsel %vm230, %v454, 0
        %v471 = vsel %vm230, %v455, 0
        %473 = vmatprep.subr.mxu0 0.0
        %474 = vmatpush1.msra.mxu0 0.0
        %475 = vmatprep.subr.mxu0 0.0
        %476 = vmatpush1.msra.mxu0 0.0
        %477 = vmatprep.subr.mxu0 0.0
        %478 = vmatpush1.msra.mxu0 0.0
        %479 = vmatprep.subr.mxu0 0.0
        %480 = vmatpush1.msra.mxu0 0.0
        %481 = vmatprep.subr.mxu0 0.0
        %482 = vmatpush1.msra.mxu0 0.0
        %483 = vmatprep.subr.mxu0 0.0
        %484 = vmatpush1.msra.mxu0 0.0
        %485 = vmatprep.subr.mxu0 0.0
        %486 = vmatpush1.msra.mxu0 0.0
        %487 = vmatprep.subr.mxu0 0.0
        %488 = vmatpush1.msra.mxu0 0.0
        %489 = vmatprep.subr.mxu0 0.0
        %490 = vmatpush1.msra.mxu0 0.0
        %491 = vmatprep.subr.mxu0 0.0
        %492 = vmatpush1.msra.mxu0 0.0
        %493 = vmatprep.subr.mxu0 0.0
        %494 = vmatpush1.msra.mxu0 0.0
        %495 = vmatprep.subr.mxu0 0.0
        %496 = vmatpush1.msra.mxu0 0.0
        %497 = vmatprep.subr.mxu0 0.0
        %498 = vmatpush1.msra.mxu0 %v460
        %499 = vmatprep.subr.mxu0 0.0
        %500 = vmatpush1.msra.mxu0 %v459
        %501 = vmatprep.subr.mxu0 0.0
        %502 = vmatpush1.msra.mxu0 %v458
        %503 = vmatprep.subr.mxu0 0.0
        %504 = vmatpush1.msra.mxu0 %v457
        %505 = vmatprep.subr.mxu0 0.0
        %506 = vmatpush2.msra.mxu0 0.0
        %507 = vmatprep.subr.mxu0 0.0
        %508 = vmatpush2.msra.mxu0 0.0
        %509 = vmatprep.subr.mxu0 0.0
        %510 = vmatpush2.msra.mxu0 0.0
        %511 = vmatprep.subr.mxu0 0.0
        %512 = vmatpush2.msra.mxu0 0.0
        %513 = vmatprep.subr.mxu0 0.0
        %514 = vmatpush2.msra.mxu0 0.0
        %515 = vmatprep.subr.mxu0 0.0
        %516 = vmatpush2.msra.mxu0 0.0
        %517 = vmatprep.subr.mxu0 0.0
        %518 = vmatpush2.msra.mxu0 0.0
        %519 = vmatprep.subr.mxu0 0.0
        %520 = vmatpush2.msra.mxu0 0.0
        %521 = vmatprep.subr.mxu0 0.0
        %522 = vmatpush2.msra.mxu0 0.0
        %523 = vmatprep.subr.mxu0 0.0
        %524 = vmatpush2.msra.mxu0 0.0
        %525 = vmatprep.subr.mxu0 0.0
        %526 = vmatpush2.msra.mxu0 0.0
        %527 = vmatprep.subr.mxu0 0.0
        %528 = vmatpush2.msra.mxu0 0.0
        %529 = vmatprep.subr.mxu0 0.0
        %530 = vmatpush2.msra.mxu0 0.0
        %531 = vmatprep.subr.mxu0 0.0
        %532 = vmatpush2.msra.mxu0 0.0
        %533 = vmatprep.subr.mxu0 0.0
        %534 = vmatpush2.msra.mxu0 0.0
        %535 = vmatprep.subr.mxu0 0.0
        %536 = vmatpush2.msra.mxu0 0.0
        %537 = vmatprep.mubr.f32.mxu0 0.0
        %538 = vmatmul.mubr.f32.gmra.mxu0 %v462
        %v539 = vpop.f32.mrf.mxu0
        %v540 = vadd.f32 0.0, %v539
        %v541 = vpop.f32.mrf.mxu0
        %542 = vmatprep.mubr.f32.mxu0 0.0
        %543 = vmatmul.mubr.f32.gmra.mxu0 %v465
        %v544 = vpop.f32.mrf.mxu0
        %v545 = vadd.f32 0.0, %v544
        %v546 = vpop.f32.mrf.mxu0
        %547 = vmatprep.mubr.f32.mxu0 0.0
        %548 = vmatmul.mubr.f32.gmra.mxu0 %v468
        %v549 = vpop.f32.mrf.mxu0
        %v550 = vadd.f32 0.0, %v549
        %v551 = vpop.f32.mrf.mxu0
        %552 = vmatprep.mubr.f32.mxu0 0.0
        %553 = vmatmul.mubr.f32.gmra.mxu0 %v471
        %v554 = vpop.f32.mrf.mxu0
        %v555 = vadd.f32 0.0, %v554
        %v556 = vpop.f32.mrf.mxu0
        %557 = vdwg.mxu0
        %v558 = vld [vmem:[%s219] sm:$0xff]
        %v559 = vld [vmem:[%s219 + $0x8] sm:$0xff]
        %v560 = vld [vmem:[%s219 + $0x10] sm:$0xff]
        %v561 = vld [vmem:[%s219 + $0x18] sm:$0xff]
        %v562 = vadd.f32 %v558, %v540
        %v563 = vadd.f32 %v559, %v545
        %v564 = vadd.f32 %v560, %v550
        %v565 = vadd.f32 %v561, %v555
        %566 = vst [vmem:[%s219] sm:$0xff] %v562
        %567 = vst [vmem:[%s219 + $0x8] sm:$0xff] %v563
        %568 = vst [vmem:[%s219 + $0x10] sm:$0xff] %v564
        %569 = vst [vmem:[%s219 + $0x18] sm:$0xff] %v565
        %s570 = scalar_lea.vmem %s195, 96 [#allocation2]
        %v571 = vld [vmem:[%s570] sm:$0xff]
        %v572 = vld [vmem:[%s570 + $0x8] sm:$0xff]
        %v573 = vld [vmem:[%s570 + $0x10] sm:$0xff]
        %v574 = vld [vmem:[%s570 + $0x18] sm:$0xff]
        %s575 = scalar_lea.vmem [#allocation5], 96
        %v576 = vld [vmem:[%s575] sm:$0xff]
        %v577 = vld [vmem:[%s575 + $0x8] sm:$0xff]
        %v578 = vld [vmem:[%s575 + $0x10] sm:$0xff]
        %v579 = vld [vmem:[%s575 + $0x18] sm:$0xff]
        %v581 = vsel %vm230, %v571, 0
        %v584 = vsel %vm230, %v572, 0
        %v587 = vsel %vm230, %v573, 0
        %v590 = vsel %vm230, %v574, 0
        %592 = vmatprep.subr.mxu0 0.0
        %593 = vmatpush1.msra.mxu0 0.0
        %594 = vmatprep.subr.mxu0 0.0
        %595 = vmatpush1.msra.mxu0 0.0
        %596 = vmatprep.subr.mxu0 0.0
        %597 = vmatpush1.msra.mxu0 0.0
        %598 = vmatprep.subr.mxu0 0.0
        %599 = vmatpush1.msra.mxu0 0.0
        %600 = vmatprep.subr.mxu0 0.0
        %601 = vmatpush1.msra.mxu0 0.0
        %602 = vmatprep.subr.mxu0 0.0
        %603 = vmatpush1.msra.mxu0 0.0
        %604 = vmatprep.subr.mxu0 0.0
        %605 = vmatpush1.msra.mxu0 0.0
        %606 = vmatprep.subr.mxu0 0.0
        %607 = vmatpush1.msra.mxu0 0.0
        %608 = vmatprep.subr.mxu0 0.0
        %609 = vmatpush1.msra.mxu0 0.0
        %610 = vmatprep.subr.mxu0 0.0
        %611 = vmatpush1.msra.mxu0 0.0
        %612 = vmatprep.subr.mxu0 0.0
        %613 = vmatpush1.msra.mxu0 0.0
        %614 = vmatprep.subr.mxu0 0.0
        %615 = vmatpush1.msra.mxu0 0.0
        %616 = vmatprep.subr.mxu0 0.0
        %617 = vmatpush1.msra.mxu0 %v579
        %618 = vmatprep.subr.mxu0 0.0
        %619 = vmatpush1.msra.mxu0 %v578
        %620 = vmatprep.subr.mxu0 0.0
        %621 = vmatpush1.msra.mxu0 %v577
        %622 = vmatprep.subr.mxu0 0.0
        %623 = vmatpush1.msra.mxu0 %v576
        %624 = vmatprep.subr.mxu0 0.0
        %625 = vmatpush2.msra.mxu0 0.0
        %626 = vmatprep.subr.mxu0 0.0
        %627 = vmatpush2.msra.mxu0 0.0
        %628 = vmatprep.subr.mxu0 0.0
        %629 = vmatpush2.msra.mxu0 0.0
        %630 = vmatprep.subr.mxu0 0.0
        %631 = vmatpush2.msra.mxu0 0.0
        %632 = vmatprep.subr.mxu0 0.0
        %633 = vmatpush2.msra.mxu0 0.0
        %634 = vmatprep.subr.mxu0 0.0
        %635 = vmatpush2.msra.mxu0 0.0
        %636 = vmatprep.subr.mxu0 0.0
        %637 = vmatpush2.msra.mxu0 0.0
        %638 = vmatprep.subr.mxu0 0.0
        %639 = vmatpush2.msra.mxu0 0.0
        %640 = vmatprep.subr.mxu0 0.0
        %641 = vmatpush2.msra.mxu0 0.0
        %642 = vmatprep.subr.mxu0 0.0
        %643 = vmatpush2.msra.mxu0 0.0
        %644 = vmatprep.subr.mxu0 0.0
        %645 = vmatpush2.msra.mxu0 0.0
        %646 = vmatprep.subr.mxu0 0.0
        %647 = vmatpush2.msra.mxu0 0.0
        %648 = vmatprep.subr.mxu0 0.0
        %649 = vmatpush2.msra.mxu0 0.0
        %650 = vmatprep.subr.mxu0 0.0
        %651 = vmatpush2.msra.mxu0 0.0
        %652 = vmatprep.subr.mxu0 0.0
        %653 = vmatpush2.msra.mxu0 0.0
        %654 = vmatprep.subr.mxu0 0.0
        %655 = vmatpush2.msra.mxu0 0.0
        %656 = vmatprep.mubr.f32.mxu0 0.0
        %657 = vmatmul.mubr.f32.gmra.mxu0 %v581
        %v658 = vpop.f32.mrf.mxu0
        %v659 = vadd.f32 0.0, %v658
        %v660 = vpop.f32.mrf.mxu0
        %661 = vmatprep.mubr.f32.mxu0 0.0
        %662 = vmatmul.mubr.f32.gmra.mxu0 %v584
        %v663 = vpop.f32.mrf.mxu0
        %v664 = vadd.f32 0.0, %v663
        %v665 = vpop.f32.mrf.mxu0
        %666 = vmatprep.mubr.f32.mxu0 0.0
        %667 = vmatmul.mubr.f32.gmra.mxu0 %v587
        %v668 = vpop.f32.mrf.mxu0
        %v669 = vadd.f32 0.0, %v668
        %v670 = vpop.f32.mrf.mxu0
        %671 = vmatprep.mubr.f32.mxu0 0.0
        %672 = vmatmul.mubr.f32.gmra.mxu0 %v590
        %v673 = vpop.f32.mrf.mxu0
        %v674 = vadd.f32 0.0, %v673
        %v675 = vpop.f32.mrf.mxu0
        %676 = vdwg.mxu0
        %v677 = vld [vmem:[%s219] sm:$0xff]
        %v678 = vld [vmem:[%s219 + $0x8] sm:$0xff]
        %v679 = vld [vmem:[%s219 + $0x10] sm:$0xff]
        %v680 = vld [vmem:[%s219 + $0x18] sm:$0xff]
        %v681 = vadd.f32 %v677, %v659
        %v682 = vadd.f32 %v678, %v664
        %v683 = vadd.f32 %v679, %v669
        %v684 = vadd.f32 %v680, %v674
        %685 = vst [vmem:[%s219] sm:$0xff] %v681
        %686 = vst [vmem:[%s219 + $0x8] sm:$0xff] %v682
        %687 = vst [vmem:[%s219 + $0x10] sm:$0xff] %v683
        %688 = vst [vmem:[%s219 + $0x18] sm:$0xff] %v684
        %s689 = sand.u32 %s91, 1
        %s690 = scalar_lea.sflag [#allocation4], %s689
        %s691 = sand.u32 %s91, 1
        %s692 = smul.addr %s691, 32
        %s693 = scalar_lea.vmem [#allocation7], %s692
        // Predicated region
        $region37: #{pixel_shuffle_1d.1} parent=27 // pred_check
          %p694 = pneg %p101
        $region38: #{pixel_shuffle_1d.1} parent=27 // pred_check_branch
          %696 = sbr.rel (%p694) target = $region40
        $region39: #{pixel_shuffle_1d.1} parent=27 // pred_region
          %s697 = smul.u32 4, %s25
          %s699 = ssub.s32 512, 512
          %700 = vsyncadd %s690, %s699
          %s701 = smul.addr %s24, 8
          %s702 = sadd.s32 %s697, %s701
          %s703 = smul.addr %s702, 128
          %s704 = scalar_lea.hbm %s2, %s703
          %s705 = sshll.u32 %s693, 4
          %s706 = int_to_ptr.vmem [resolvable:$true] %s705
          %711 = dma.vmem_to_hbm [thread:$0]  %s706, 512, %s704, %s690, 128, 128, 8
        $region40: #{pixel_shuffle_1d.1} parent=27 // pred_fallthru
          _
      $region28: #{pixel_shuffle_1d.1} parent=5 // pred_fallthru
        _
      %p712 = scmp.le.s32.totalorder 2, %s15
      // Predicated region
      $region41: #{pixel_shuffle_1d.1} parent=5 // pred_check
        %p713 = pneg %p712
      $region42: #{pixel_shuffle_1d.1} parent=5 // pred_check_branch
        %715 = sbr.rel (%p713) target = $region44
      $region43: #{pixel_shuffle_1d.1} parent=5 // pred_region
        %s716 = ssub.s32 %s15, 2
        // Predicated region
        $region45: #{pixel_shuffle_1d.1} parent=43 // pred_check
          %p717 = pneg %p107
        $region46: #{pixel_shuffle_1d.1} parent=43 // pred_check_branch
          %719 = sbr.rel (%p717) target = $region48
        $region47: #{pixel_shuffle_1d.1} parent=43 // pred_region
          %s720 = sand.u32 %s92, 1
          %s721 = scalar_lea.sflag [#allocation4], %s720
          %s722 = sand.u32 %s92, 1
          %s723 = smul.addr %s722, 32
          %s724 = scalar_lea.vmem [#allocation7], %s723
          %725 = dma.done %s721, 512
        $region48: #{pixel_shuffle_1d.1} parent=43 // pred_fallthru
          _
      $region44: #{pixel_shuffle_1d.1} parent=5 // pred_fallthru
        _
    $region6: #{pixel_shuffle_1d.1} parent=1 // loop_footer
      %s19 = sadd.s32 1, %s15
    $region7: #{pixel_shuffle_1d.1} parent=1 // loop_footer_branch
      %14 = sbr.rel target = $region3
    $region8: #{pixel_shuffle_1d.1} parent=1 // loop_exit
      _
    %726 = vsyncpa [#allocation3], 1
    %s727 = scalar_lea.sflag [#allocation3], 1
    %728 = vsyncpa %s727, 1
    %729 = vsyncpa [#allocation6], 1
    %730 = vsyncpa [#allocation4], 1
    %s731 = scalar_lea.sflag [#allocation4], 1
    %732 = vsyncpa %s731, 1

</llo_original>
